<compile_context>
chip_gen: v5e
topology: v5e:2x2
jax: 0.10.0
libtpu: 0.0.40
codegen_flags: <defaults>
</compile_context>

<pallas_src>
import jax
import jax.numpy as jnp
from jax import lax
from jax.experimental import pallas as pl
from jax.experimental.pallas import tpu as pltpu

_SUBLANE = 8     # f32 sublane quantum
_LANES = 128     # vreg lane width


# ----------------------------------------------------------------------------
# Kernels
# ----------------------------------------------------------------------------
def _cross_packed_kernel(x0_ref, xl_ref, w_ref, b_ref, seg_ref, o_ref):
    """Lane-dense variant: each VMEM row packs R = 128 // D logical rows.

    x0_ref, xl_ref, o_ref : (TB, 128)
    w_ref, b_ref          : (1, 128)   weight / bias tiled R times
    seg_ref               : (128,128)  block-diag ones, seg[i,j]=1 iff i//D==j//D
    """
    x0 = x0_ref[...]
    xl = xl_ref[...]
    xlw = xl * w_ref[...]                                   # VPU
    # Segmented lane reduce on the (otherwise idle) MXU:
    #   s[r, j] = sum_{i in segment(j)} xl[r, i] * w[i]
    # Result is already lane-aligned with x0 (no (TB,1) re-broadcast needed).
    s = jnp.dot(xlw, seg_ref[...],
                preferred_element_type=jnp.float32,
                precision=lax.Precision.HIGHEST)
    o_ref[...] = (x0 * s + (b_ref[...] + xl)).astype(o_ref.dtype)


def _cross_rowwise_kernel(x0_ref, xl_ref, w_ref, b_ref, o_ref):
    """General-D fallback (128 % D != 0): plain lane reduce on the XLU."""
    x0 = x0_ref[...]
    xl = xl_ref[...]
    s = jnp.sum(xl * w_ref[...], axis=-1, keepdims=True)    # VPU mul + XLU reduce
    o_ref[...] = (x0 * s + (b_ref[...] + xl)).astype(o_ref.dtype)


# ----------------------------------------------------------------------------
# Tiling helpers
# ----------------------------------------------------------------------------
def _vmem_budget_bytes():
    """Generation-aware (tile budget, vmem_limit) pair.

    v7x has 64 MiB VMEM per TensorCore -> keep headroom (~40 / 48 MiB);
    v5e/v6e have 128 MiB -> allow bigger double-buffered tiles (~48 / 64 MiB).
    """
    try:
        cap = pltpu.get_tpu_info().vmem_capacity_bytes
    except Exception:
        cap = 64 << 20            # unknown: assume smallest (v7x-like) capacity
    if cap <= (64 << 20):
        return 40 << 20, 48 << 20
    return 48 << 20, 64 << 20


def _pick_tile_rows(total_rows, lane_width, itemsize, budget, max_rows=16384):
    """Largest row tile whose 3-stream x 2-buffer footprint fits `budget`."""
    lanes = ((max(lane_width, 1) + _LANES - 1) // _LANES) * _LANES  # VMEM lane pad
    per_row = 3 * 2 * lanes * itemsize
    return max(1, min(budget // per_row, max_rows))


def _sanitize_tile(tb, rows):
    """Clamp/align a row tile so the BlockSpec is always legal:
    either a multiple of 8 sublanes, or the full row extent."""
    tb = max(1, min(int(tb), rows))
    if tb == rows:
        return rows
    tb = (tb // _SUBLANE) * _SUBLANE
    if tb < _SUBLANE:
        tb = min(_SUBLANE, rows)
    return tb


# ----------------------------------------------------------------------------
# Public wrapper
# ----------------------------------------------------------------------------
def cross_layer(x0: jax.Array, xl: jax.Array,
                weight: jax.Array, bias: jax.Array,
                *, tile_rows: int | None = None,
                donate_xl: bool = False) -> jax.Array:
    """Pallas CrossLayer.forward:  out = x0 * (xl @ w) + bias.T + xl.

    Args:
      x0, xl:  (B, D) float32
      weight:  (D, 1) float32 (PyTorch parameter layout)
      bias:    (D, 1) float32
      tile_rows: optional batch-row tile override.
      donate_xl: alias xl's HBM buffer with the output. This is only a true
        in-place aliasing when no repack-pad copy happens (B % (128//D) == 0
        on the lane-dense path); otherwise the freshly packed copy is aliased
        and the memory saving is void (the result is still correct).
    Returns:
      (B, D) float32
    """
    B, D = x0.shape
    assert xl.shape == (B, D) and weight.shape == (D, 1) and bias.shape == (D, 1)
    itemsize = jnp.dtype(x0.dtype).itemsize
    budget, vmem_limit = _vmem_budget_bytes()
    extra = {"input_output_aliases": {1: 0}} if donate_xl else {}

    packable = (D <= _LANES) and (_LANES % D == 0)

    if packable:
        R = _LANES // D
        L = R * D                                  # == 128: fully lane-dense blocks
        if B % R:
            # TODO(synk): a split main+tail dispatch would avoid this full-array
            # pad copy; it only triggers when B is not a multiple of 128 // D.
            pad = R - (B % R)
            x0 = jnp.pad(x0, ((0, pad), (0, 0)))
            xl = jnp.pad(xl, ((0, pad), (0, 0)))
        Bp = x0.shape[0]
        rows = Bp // R
        # Lane-dense repack (layout plumbing only, fuses upstream under jit).
        x0_k = x0.reshape(rows, L)
        xl_k = xl.reshape(rows, L)
        w_row = jnp.tile(weight.reshape(1, D), (1, R))
        b_row = jnp.tile(bias.reshape(1, D), (1, R))
        seg = (lax.broadcasted_iota(jnp.int32, (L, L), 0) // D ==
               lax.broadcasted_iota(jnp.int32, (L, L), 1) // D).astype(x0.dtype)

        tb = tile_rows if tile_rows is not None else _pick_tile_rows(
            rows, L, itemsize, budget)
        tb = _sanitize_tile(tb, rows)
        grid = (pl.cdiv(rows, tb),)                # ragged tail -> masked boundary block

        out = pl.pallas_call(
            _cross_packed_kernel,
            out_shape=jax.ShapeDtypeStruct((rows, L), x0.dtype),
            grid_spec=pltpu.PrefetchScalarGridSpec(
                num_scalar_prefetch=0,
                grid=grid,
                in_specs=[
                    pl.BlockSpec((tb, L), lambda i: (i, 0)),   # x0 tile
                    pl.BlockSpec((tb, L), lambda i: (i, 0)),   # xl tile
                    pl.BlockSpec((1, L), lambda i: (0, 0)),    # weight (resident)
                    pl.BlockSpec((1, L), lambda i: (0, 0)),    # bias   (resident)
                    pl.BlockSpec((L, L), lambda i: (0, 0)),    # segment ones (resident)
                ],
                out_specs=pl.BlockSpec((tb, L), lambda i: (i, 0)),
            ),
            compiler_params=pltpu.CompilerParams(
                # TODO(synk): on v7x, verify both TCs get grid steps; switch to
                # pltpu.CORE_PARALLEL if a profile shows single-TC execution.
                dimension_semantics=("parallel",),
                vmem_limit_bytes=vmem_limit,
            ),
            cost_estimate=pl.CostEstimate(
                flops=2 * rows * L * L + 5 * rows * L,
                transcendentals=0,
                bytes_accessed=3 * rows * L * itemsize + (2 * L + L * L) * itemsize,
            ),
            **extra,
        )(x0_k, xl_k, w_row, b_row, seg)
        out = out.reshape(Bp, D)
        return out[:B] if Bp != B else out

    # ---- Fallback: D does not divide 128 (or D > 128) -> row-wise kernel ----
    w_row = weight.reshape(1, D)
    b_row = bias.reshape(1, D)
    tb = tile_rows if tile_rows is not None else _pick_tile_rows(
        B, D, itemsize, budget)
    tb = _sanitize_tile(tb, B)
    grid = (pl.cdiv(B, tb),)
    return pl.pallas_call(
        _cross_rowwise_kernel,
        out_shape=jax.ShapeDtypeStruct((B, D), x0.dtype),
        grid_spec=pltpu.PrefetchScalarGridSpec(
            num_scalar_prefetch=0,
            grid=grid,
            in_specs=[
                pl.BlockSpec((tb, D), lambda i: (i, 0)),
                pl.BlockSpec((tb, D), lambda i: (i, 0)),
                pl.BlockSpec((1, D), lambda i: (0, 0)),
                pl.BlockSpec((1, D), lambda i: (0, 0)),
            ],
            out_specs=pl.BlockSpec((tb, D), lambda i: (i, 0)),
        ),
        compiler_params=pltpu.CompilerParams(
            dimension_semantics=("parallel",),
            vmem_limit_bytes=vmem_limit,
        ),
        cost_estimate=pl.CostEstimate(
            flops=5 * B * D,
            transcendentals=0,
            bytes_accessed=3 * B * D * itemsize + 2 * D * itemsize,
        ),
        **extra,
    )(x0, xl, w_row, b_row)


# ----------------------------------------------------------------------------
# Reference & tests
# ----------------------------------------------------------------------------
def cross_layer_ref(x0, xl, weight, bias):
    """Pure-JAX reference for correctness checking."""
    return x0 * (xl @ weight) + bias.T + xl


def _check(B, D, key, **kwargs):
    k0, k1, k2 = jax.random.split(key, 3)
    x0 = jax.random.normal(k0, (B, D), dtype=jnp.float32)
    xl = jax.random.normal(k1, (B, D), dtype=jnp.float32)
    # Parameter init mirroring the PyTorch module (randn * 0.01, zeros).
    weight = jax.random.normal(k2, (D, 1), dtype=jnp.float32) * 0.01
    bias = jnp.zeros((D, 1), dtype=jnp.float32)

    out = jax.block_until_ready(cross_layer(x0, xl, weight, bias, **kwargs))
    ref = cross_layer_ref(x0, xl, weight, bias)
    assert out.shape == (B, D)
    assert jnp.allclose(out, ref, atol=2e-5, rtol=2e-5), (
        f"mismatch vs reference at B={B}, D={D}, kwargs={kwargs}")


if __name__ == "__main__":
    key = jax.random.PRNGKey(0)
    keys = jax.random.split(key, 6)

    _check(8, 32, keys[0])                  # packed path, single block
    _check(20, 32, keys[1])                 # rows < 8 -> full-extent block
    _check(22, 32, keys[2])                 # B % (128//D) != 0 -> small repack pad
    _check(72, 32, keys[3], tile_rows=8)    # multi-tile grid + masked ragged tail
    _check(8, 1, keys[4])                   # D == 1 (exact PyTorch reference case)
    _check(16, 48, keys[5])                 # 128 % D != 0 -> row-wise fallback

    print("KERNEL_OK")
</pallas_src>

<mosaic_0001>
module attributes {stable_mosaic.version = 11 : i64} {
  func.func @_cross_packed_kernel(%arg0: i32, %arg1: memref<2x128xf32, #tpu.memory_space<vmem>>, %arg2: memref<2x128xf32, #tpu.memory_space<vmem>>, %arg3: memref<1x128xf32, #tpu.memory_space<vmem>>, %arg4: memref<1x128xf32, #tpu.memory_space<vmem>>, %arg5: memref<128x128xf32, #tpu.memory_space<vmem>>, %arg6: memref<2x128xf32, #tpu.memory_space<vmem>>) attributes {dimension_semantics = [#tpu.dimension_semantics<parallel>], iteration_bounds = array<i64: 1>, scalar_prefetch = 0 : i64, scratch_operands = 0 : i64, tpu.core_type = #tpu.core_type<tc>, window_params = [{transform_indices = @transform_0, window_bounds = array<i64: 2, 128>}, {transform_indices = @transform_1, window_bounds = array<i64: 2, 128>}, {pipeline_mode = #tpu.pipeline_mode<synchronous>, transform_indices = @transform_2, window_bounds = array<i64: 1, 128>}, {pipeline_mode = #tpu.pipeline_mode<synchronous>, transform_indices = @transform_3, window_bounds = array<i64: 1, 128>}, {pipeline_mode = #tpu.pipeline_mode<synchronous>, transform_indices = @transform_4, window_bounds = array<i64: 128, 128>}, {transform_indices = @transform_5, window_bounds = array<i64: 2, 128>}]} {
    %c0 = arith.constant 0 : index
    %c0_0 = arith.constant 0 : index
    %0 = vector.load %arg1[%c0, %c0_0] : memref<2x128xf32, #tpu.memory_space<vmem>>, vector<2x128xf32>
    %c0_1 = arith.constant 0 : index
    %c0_2 = arith.constant 0 : index
    %1 = vector.load %arg2[%c0_1, %c0_2] : memref<2x128xf32, #tpu.memory_space<vmem>>, vector<2x128xf32>
    %c0_3 = arith.constant 0 : index
    %c0_4 = arith.constant 0 : index
    %2 = vector.load %arg3[%c0_3, %c0_4] : memref<1x128xf32, #tpu.memory_space<vmem>>, vector<1x128xf32>
    %3 = vector.broadcast %2 : vector<1x128xf32> to vector<2x128xf32>
    %4 = arith.mulf %1, %3 : vector<2x128xf32>
    %c0_5 = arith.constant 0 : index
    %c0_6 = arith.constant 0 : index
    %5 = vector.load %arg5[%c0_5, %c0_6] : memref<128x128xf32, #tpu.memory_space<vmem>>, vector<128x128xf32>
    %cst = arith.constant dense<0.000000e+00> : vector<2x128xf32>
    %6 = tpu.matmul %4, %5, %cst {dimension_numbers = #tpu.dot_dimension_numbers<[1], [0], [0], [1], [0, 0, 1, 1], [], []>, precision = #tpu.contract_precision<fp32>} : vector<2x128xf32>, vector<128x128xf32>, vector<2x128xf32> -> vector<2x128xf32>
    %7 = arith.mulf %0, %6 : vector<2x128xf32>
    %c0_7 = arith.constant 0 : index
    %c0_8 = arith.constant 0 : index
    %8 = vector.load %arg4[%c0_7, %c0_8] : memref<1x128xf32, #tpu.memory_space<vmem>>, vector<1x128xf32>
    %9 = vector.broadcast %8 : vector<1x128xf32> to vector<2x128xf32>
    %10 = arith.addf %9, %1 : vector<2x128xf32>
    %11 = arith.addf %7, %10 : vector<2x128xf32>
    %c0_9 = arith.constant 0 : index
    %c0_10 = arith.constant 0 : index
    %12 = vector.load %arg6[%c0_9, %c0_10] : memref<2x128xf32, #tpu.memory_space<vmem>>, vector<2x128xf32>
    tpu.vector_store %arg6[%c0_9, %c0_10], %11 {strides = array<i32>} : memref<2x128xf32, #tpu.memory_space<vmem>>, vector<2x128xf32>,
    return
  }
  func.func @transform_0(%arg0: i32) -> (i32, i32) {
    %c0_i32 = arith.constant 0 : i32
    %c0_i32_0 = arith.constant 0 : i32
    return %arg0, %c0_i32 : i32, i32
  }
  func.func @transform_1(%arg0: i32) -> (i32, i32) {
    %c0_i32 = arith.constant 0 : i32
    %c0_i32_0 = arith.constant 0 : i32
    return %arg0, %c0_i32 : i32, i32
  }
  func.func @transform_2(%arg0: i32) -> (i32, i32) {
    %c0_i32 = arith.constant 0 : i32
    %c0_i32_0 = arith.constant 0 : i32
    %c0_i32_1 = arith.constant 0 : i32
    return %c0_i32, %c0_i32_0 : i32, i32
  }
  func.func @transform_3(%arg0: i32) -> (i32, i32) {
    %c0_i32 = arith.constant 0 : i32
    %c0_i32_0 = arith.constant 0 : i32
    %c0_i32_1 = arith.constant 0 : i32
    return %c0_i32, %c0_i32_0 : i32, i32
  }
  func.func @transform_4(%arg0: i32) -> (i32, i32) {
    %c0_i32 = arith.constant 0 : i32
    %c0_i32_0 = arith.constant 0 : i32
    %c0_i32_1 = arith.constant 0 : i32
    return %c0_i32, %c0_i32_0 : i32, i32
  }
  func.func @transform_5(%arg0: i32) -> (i32, i32) {
    %c0_i32 = arith.constant 0 : i32
    %c0_i32_0 = arith.constant 0 : i32
    return %arg0, %c0_i32 : i32, i32
  }
}

</mosaic_0001>

<llo_original>
// kernel: tpu_custom_call.1
$region0: #{tpu_custom_call.1}
  #allocation0 [shape = 'u32[]', space=smem, size = 0x4, offset = 0x4, fixed_abs, tag = 'smem constant byte address 0x4 - core index']
  #allocation1 [shape = 'u32[72,128]{1,0:T(1,128)}', space=vmem, size = 0x9000, scoped, tag = 'internal scratch']
  %s0 = inlined_call_operand.hbm [shape: f32[2,128], index: 0, kind: input, shape index: {}]
  %s1 = inlined_call_operand.hbm [shape: f32[2,128], index: 1, kind: input, shape index: {}]
  %s2 = inlined_call_operand.vmem [shape: f32[1,128], index: 2, kind: input, shape index: {}]
  %s3 = inlined_call_operand.vmem [shape: f32[1,128], index: 3, kind: input, shape index: {}]
  %s4 = inlined_call_operand.hbm [shape: f32[128,128], index: 4, kind: input, shape index: {}]
  %s5 = inlined_call_operand.hbm [shape: f32[2,128], index: 5, kind: output, shape index: {}]
  %s6 = sld [smem:[#allocation0]]
  $region42: #{tpu_custom_call.1} parent=0
    _
  %s8 = ssub.s32 1, %s6
  %s9 = scalar_select 0, %s8, %s6
  $region1: #{tpu_custom_call.1} parent=0
    #allocation2 [shape = 'u8[1024]{0}', space=vmem, size = 0x400, scoped, tag = 'input window, operand 0, single buffered']
    #allocation3 [shape = 's32[1]{0}', space=sflag, size = 0x4, scoped, tag = 'scoped memory for tpu_custom_call.1']
    #allocation4 [shape = 's32[1]{0}', space=sflag, size = 0x4, scoped, tag = 'scoped memory for tpu_custom_call.1']
    #allocation5 [shape = 'u8[1024]{0}', space=vmem, size = 0x400, scoped, tag = 'input window, operand 1, single buffered']
    #allocation6 [shape = 's32[1]{0}', space=sflag, size = 0x4, scoped, tag = 'scoped memory for tpu_custom_call.1']
    #allocation7 [shape = 'u8[65536]{0}', space=vmem, size = 0x10000, scoped, tag = 'input window, operand 4, single buffered']
    #allocation8 [shape = 'u8[1024]{0}', space=vmem, size = 0x400, scoped, tag = 'output window, operand 0, single buffered']
    %10 = vsyncpa [#allocation3], 0
    %11 = vsyncpa [#allocation6], 0
    %12 = vsyncpa [#allocation4], 0
    // Predicated region
    $region2: #{tpu_custom_call.1} parent=1 // pred_check
      _
    $region3: #{tpu_custom_call.1} parent=1 // pred_check_branch
      %14 = sbr.rel (0) target = $region5
    $region4: #{tpu_custom_call.1} parent=1 // pred_region
      %16 = vsyncadd [#allocation3], 0
      %s18 = sshll.u32 %s0, 4
      %s19 = int_to_ptr.hbm [resolvable:$true] %s18
      %s20 = sshll.u32 [#allocation2], 4
      %s21 = int_to_ptr.vmem [resolvable:$true] %s20
      %23 = dma.hbm_to_vmem [thread:$0]  %s19, 32, %s21, [#allocation3]
    $region5: #{tpu_custom_call.1} parent=1 // pred_fallthru
      _
    // Predicated region
    $region6: #{tpu_custom_call.1} parent=1 // pred_check
      _
    $region7: #{tpu_custom_call.1} parent=1 // pred_check_branch
      %25 = sbr.rel (0) target = $region9
    $region8: #{tpu_custom_call.1} parent=1 // pred_region
      %27 = vsyncadd [#allocation6], 0
      %s29 = sshll.u32 %s1, 4
      %s30 = int_to_ptr.hbm [resolvable:$true] %s29
      %s31 = sshll.u32 [#allocation5], 4
      %s32 = int_to_ptr.vmem [resolvable:$true] %s31
      %34 = dma.hbm_to_vmem [thread:$0]  %s30, 32, %s32, [#allocation6]
    $region9: #{tpu_custom_call.1} parent=1 // pred_fallthru
      _
    // Predicated region
    $region10: #{tpu_custom_call.1} parent=1 // pred_check
      _
    $region11: #{tpu_custom_call.1} parent=1 // pred_check_branch
      %36 = sbr.rel (0) target = $region13
    $region12: #{tpu_custom_call.1} parent=1 // pred_region
      _
    $region13: #{tpu_custom_call.1} parent=1 // pred_fallthru
      _
    // Predicated region
    $region14: #{tpu_custom_call.1} parent=1 // pred_check
      _
    $region15: #{tpu_custom_call.1} parent=1 // pred_check_branch
      %38 = sbr.rel (0) target = $region17
    $region16: #{tpu_custom_call.1} parent=1 // pred_region
      _
    $region17: #{tpu_custom_call.1} parent=1 // pred_fallthru
      _
    // Predicated region
    $region18: #{tpu_custom_call.1} parent=1 // pred_check
      _
    $region19: #{tpu_custom_call.1} parent=1 // pred_check_branch
      %40 = sbr.rel (0) target = $region21
    $region20: #{tpu_custom_call.1} parent=1 // pred_region
      %42 = vsyncadd [#allocation6], 0
      %s43 = sshll.u32 %s4, 4
      %s44 = int_to_ptr.hbm [resolvable:$true] %s43
      %s45 = sshll.u32 [#allocation7], 4
      %s46 = int_to_ptr.vmem [resolvable:$true] %s45
      %51 = dma.hbm_to_vmem [thread:$0]  %s44, 2048, %s46, [#allocation6], 128, 128, 8
    $region21: #{tpu_custom_call.1} parent=1 // pred_fallthru
      _
    // Predicated region
    $region22: #{tpu_custom_call.1} parent=1 // pred_check
      _
    $region23: #{tpu_custom_call.1} parent=1 // pred_check_branch
      %53 = sbr.rel (0) target = $region25
    $region24: #{tpu_custom_call.1} parent=1 // pred_region
      %55 = dma.done [#allocation3], 32
    $region25: #{tpu_custom_call.1} parent=1 // pred_fallthru
      _
    // Predicated region
    $region26: #{tpu_custom_call.1} parent=1 // pred_check
      _
    $region27: #{tpu_custom_call.1} parent=1 // pred_check_branch
      %57 = sbr.rel (0) target = $region29
    $region28: #{tpu_custom_call.1} parent=1 // pred_region
      %59 = dma.done [#allocation6], 32
    $region29: #{tpu_custom_call.1} parent=1 // pred_fallthru
      _
    // Predicated region
    $region30: #{tpu_custom_call.1} parent=1 // pred_check
      _
    $region31: #{tpu_custom_call.1} parent=1 // pred_check_branch
      %61 = sbr.rel (0) target = $region33
    $region32: #{tpu_custom_call.1} parent=1 // pred_region
      %63 = dma.done [#allocation6], 2048
    $region33: #{tpu_custom_call.1} parent=1 // pred_fallthru
      _
    %v64 = vld [vmem:[#allocation2] sm:$0x3]
    %v65 = vld [vmem:[#allocation5] sm:$0x3]
    %v66 = vld [vmem:[%s2] sm:$0x1]
    %v68 = vperm.slane %v66, 0
    %v70 = vmul.f32 %v65, %v68
    %v71 = vld [vmem:[#allocation7] sm:$0xff]
    %v72 = vld [vmem:[#allocation7 + $0x8] sm:$0xff]
    %v73 = vld [vmem:[#allocation7 + $0x10] sm:$0xff]
    %v74 = vld [vmem:[#allocation7 + $0x18] sm:$0xff]
    %v75 = vld [vmem:[#allocation7 + $0x20] sm:$0xff]
    %v76 = vld [vmem:[#allocation7 + $0x28] sm:$0xff]
    %v77 = vld [vmem:[#allocation7 + $0x30] sm:$0xff]
    %v78 = vld [vmem:[#allocation7 + $0x38] sm:$0xff]
    %v79 = vld [vmem:[#allocation7 + $0x40] sm:$0xff]
    %v80 = vld [vmem:[#allocation7 + $0x48] sm:$0xff]
    %v81 = vld [vmem:[#allocation7 + $0x50] sm:$0xff]
    %v82 = vld [vmem:[#allocation7 + $0x58] sm:$0xff]
    %v83 = vld [vmem:[#allocation7 + $0x60] sm:$0xff]
    %v84 = vld [vmem:[#allocation7 + $0x68] sm:$0xff]
    %v85 = vld [vmem:[#allocation7 + $0x70] sm:$0xff]
    %v86 = vld [vmem:[#allocation7 + $0x78] sm:$0xff]
    %v87 = vand.u32 %v86, 4294901760
    %88 = vmatpush.msra.mxu0 %v87
    %v89 = vand.u32 %v85, 4294901760
    %90 = vmatpush.msra.mxu0 %v89
    %v91 = vand.u32 %v84, 4294901760
    %92 = vmatpush.msra.mxu0 %v91
    %v93 = vand.u32 %v83, 4294901760
    %94 = vmatpush.msra.mxu0 %v93
    %v95 = vand.u32 %v82, 4294901760
    %96 = vmatpush.msra.mxu0 %v95
    %v97 = vand.u32 %v81, 4294901760
    %98 = vmatpush.msra.mxu0 %v97
    %v99 = vand.u32 %v80, 4294901760
    %100 = vmatpush.msra.mxu0 %v99
    %v101 = vand.u32 %v79, 4294901760
    %102 = vmatpush.msra.mxu0 %v101
    %v103 = vand.u32 %v78, 4294901760
    %104 = vmatpush.msra.mxu0 %v103
    %v105 = vand.u32 %v77, 4294901760
    %106 = vmatpush.msra.mxu0 %v105
    %v107 = vand.u32 %v76, 4294901760
    %108 = vmatpush.msra.mxu0 %v107
    %v109 = vand.u32 %v75, 4294901760
    %110 = vmatpush.msra.mxu0 %v109
    %v111 = vand.u32 %v74, 4294901760
    %112 = vmatpush.msra.mxu0 %v111
    %v113 = vand.u32 %v73, 4294901760
    %114 = vmatpush.msra.mxu0 %v113
    %v115 = vand.u32 %v72, 4294901760
    %116 = vmatpush.msra.mxu0 %v115
    %v117 = vand.u32 %v71, 4294901760
    %118 = vmatpush.msra.mxu0 %v117
    %v119 = vand.u32 %v70, 4294901760
    %v120 = vsub.f32 %v70, %v119
    %v121 = vand.u32 %v120, 4294901760
    %v122 = vsub.f32 %v120, %v121
    %v123 = vand.u32 %v122, 4294901760
    %124 = vmatmul.f32.gmra.mxu0 %v123
    %v125 = vpop.f32.mrf.mxu0
    %v126 = vadd.f32 0.0, %v125
    %127 = vdwg.mxu0
    %v128 = vand.u32 %v86, 4294901760
    %v129 = vsub.f32 %v86, %v128
    %v130 = vand.u32 %v129, 4294901760
    %v131 = vsub.f32 %v129, %v130
    %v132 = vand.u32 %v131, 4294901760
    %133 = vmatpush.msra.mxu0 %v132
    %v134 = vand.u32 %v85, 4294901760
    %v135 = vsub.f32 %v85, %v134
    %v136 = vand.u32 %v135, 4294901760
    %v137 = vsub.f32 %v135, %v136
    %v138 = vand.u32 %v137, 4294901760
    %139 = vmatpush.msra.mxu0 %v138
    %v140 = vand.u32 %v84, 4294901760
    %v141 = vsub.f32 %v84, %v140
    %v142 = vand.u32 %v141, 4294901760
    %v143 = vsub.f32 %v141, %v142
    %v144 = vand.u32 %v143, 4294901760
    %145 = vmatpush.msra.mxu0 %v144
    %v146 = vand.u32 %v83, 4294901760
    %v147 = vsub.f32 %v83, %v146
    %v148 = vand.u32 %v147, 4294901760
    %v149 = vsub.f32 %v147, %v148
    %v150 = vand.u32 %v149, 4294901760
    %151 = vmatpush.msra.mxu0 %v150
    %v152 = vand.u32 %v82, 4294901760
    %v153 = vsub.f32 %v82, %v152
    %v154 = vand.u32 %v153, 4294901760
    %v155 = vsub.f32 %v153, %v154
    %v156 = vand.u32 %v155, 4294901760
    %157 = vmatpush.msra.mxu0 %v156
    %v158 = vand.u32 %v81, 4294901760
    %v159 = vsub.f32 %v81, %v158
    %v160 = vand.u32 %v159, 4294901760
    %v161 = vsub.f32 %v159, %v160
    %v162 = vand.u32 %v161, 4294901760
    %163 = vmatpush.msra.mxu0 %v162
    %v164 = vand.u32 %v80, 4294901760
    %v165 = vsub.f32 %v80, %v164
    %v166 = vand.u32 %v165, 4294901760
    %v167 = vsub.f32 %v165, %v166
    %v168 = vand.u32 %v167, 4294901760
    %169 = vmatpush.msra.mxu0 %v168
    %v170 = vand.u32 %v79, 4294901760
    %v171 = vsub.f32 %v79, %v170
    %v172 = vand.u32 %v171, 4294901760
    %v173 = vsub.f32 %v171, %v172
    %v174 = vand.u32 %v173, 4294901760
    %175 = vmatpush.msra.mxu0 %v174
    %v176 = vand.u32 %v78, 4294901760
    %v177 = vsub.f32 %v78, %v176
    %v178 = vand.u32 %v177, 4294901760
    %v179 = vsub.f32 %v177, %v178
    %v180 = vand.u32 %v179, 4294901760
    %181 = vmatpush.msra.mxu0 %v180
    %v182 = vand.u32 %v77, 4294901760
    %v183 = vsub.f32 %v77, %v182
    %v184 = vand.u32 %v183, 4294901760
    %v185 = vsub.f32 %v183, %v184
    %v186 = vand.u32 %v185, 4294901760
    %187 = vmatpush.msra.mxu0 %v186
    %v188 = vand.u32 %v76, 4294901760
    %v189 = vsub.f32 %v76, %v188
    %v190 = vand.u32 %v189, 4294901760
    %v191 = vsub.f32 %v189, %v190
    %v192 = vand.u32 %v191, 4294901760
    %193 = vmatpush.msra.mxu0 %v192
    %v194 = vand.u32 %v75, 4294901760
    %v195 = vsub.f32 %v75, %v194
    %v196 = vand.u32 %v195, 4294901760
    %v197 = vsub.f32 %v195, %v196
    %v198 = vand.u32 %v197, 4294901760
    %199 = vmatpush.msra.mxu0 %v198
    %v200 = vand.u32 %v74, 4294901760
    %v201 = vsub.f32 %v74, %v200
    %v202 = vand.u32 %v201, 4294901760
    %v203 = vsub.f32 %v201, %v202
    %v204 = vand.u32 %v203, 4294901760
    %205 = vmatpush.msra.mxu0 %v204
    %v206 = vand.u32 %v73, 4294901760
    %v207 = vsub.f32 %v73, %v206
    %v208 = vand.u32 %v207, 4294901760
    %v209 = vsub.f32 %v207, %v208
    %v210 = vand.u32 %v209, 4294901760
    %211 = vmatpush.msra.mxu0 %v210
    %v212 = vand.u32 %v72, 4294901760
    %v213 = vsub.f32 %v72, %v212
    %v214 = vand.u32 %v213, 4294901760
    %v215 = vsub.f32 %v213, %v214
    %v216 = vand.u32 %v215, 4294901760
    %217 = vmatpush.msra.mxu0 %v216
    %v218 = vand.u32 %v71, 4294901760
    %v219 = vsub.f32 %v71, %v218
    %v220 = vand.u32 %v219, 4294901760
    %v221 = vsub.f32 %v219, %v220
    %v222 = vand.u32 %v221, 4294901760
    %223 = vmatpush.msra.mxu0 %v222
    %v224 = vand.u32 %v70, 4294901760
    %225 = vmatmul.f32.gmra.mxu0 %v224
    %v226 = vpop.f32.mrf.mxu0
    %v227 = vadd.f32 %v126, %v226
    %228 = vdwg.mxu0
    %v229 = vand.u32 %v86, 4294901760
    %v230 = vsub.f32 %v86, %v229
    %231 = vmatpush.msra.mxu0 %v230
    %v232 = vand.u32 %v85, 4294901760
    %v233 = vsub.f32 %v85, %v232
    %234 = vmatpush.msra.mxu0 %v233
    %v235 = vand.u32 %v84, 4294901760
    %v236 = vsub.f32 %v84, %v235
    %237 = vmatpush.msra.mxu0 %v236
    %v238 = vand.u32 %v83, 4294901760
    %v239 = vsub.f32 %v83, %v238
    %240 = vmatpush.msra.mxu0 %v239
    %v241 = vand.u32 %v82, 4294901760
    %v242 = vsub.f32 %v82, %v241
    %243 = vmatpush.msra.mxu0 %v242
    %v244 = vand.u32 %v81, 4294901760
    %v245 = vsub.f32 %v81, %v244
    %246 = vmatpush.msra.mxu0 %v245
    %v247 = vand.u32 %v80, 4294901760
    %v248 = vsub.f32 %v80, %v247
    %249 = vmatpush.msra.mxu0 %v248
    %v250 = vand.u32 %v79, 4294901760
    %v251 = vsub.f32 %v79, %v250
    %252 = vmatpush.msra.mxu0 %v251
    %v253 = vand.u32 %v78, 4294901760
    %v254 = vsub.f32 %v78, %v253
    %255 = vmatpush.msra.mxu0 %v254
    %v256 = vand.u32 %v77, 4294901760
    %v257 = vsub.f32 %v77, %v256
    %258 = vmatpush.msra.mxu0 %v257
    %v259 = vand.u32 %v76, 4294901760
    %v260 = vsub.f32 %v76, %v259
    %261 = vmatpush.msra.mxu0 %v260
    %v262 = vand.u32 %v75, 4294901760
    %v263 = vsub.f32 %v75, %v262
    %264 = vmatpush.msra.mxu0 %v263
    %v265 = vand.u32 %v74, 4294901760
    %v266 = vsub.f32 %v74, %v265
    %267 = vmatpush.msra.mxu0 %v266
    %v268 = vand.u32 %v73, 4294901760
    %v269 = vsub.f32 %v73, %v268
    %270 = vmatpush.msra.mxu0 %v269
    %v271 = vand.u32 %v72, 4294901760
    %v272 = vsub.f32 %v72, %v271
    %273 = vmatpush.msra.mxu0 %v272
    %v274 = vand.u32 %v71, 4294901760
    %v275 = vsub.f32 %v71, %v274
    %276 = vmatpush.msra.mxu0 %v275
    %v277 = vand.u32 %v70, 4294901760
    %v278 = vsub.f32 %v70, %v277
    %279 = vmatmul.f32.gmra.mxu0 %v278
    %v280 = vpop.f32.mrf.mxu0
    %v281 = vadd.f32 %v227, %v280
    %282 = vdwg.mxu0
    %v283 = vand.u32 %v86, 4294901760
    %284 = vmatpush.msra.mxu0 %v283
    %v285 = vand.u32 %v85, 4294901760
    %286 = vmatpush.msra.mxu0 %v285
    %v287 = vand.u32 %v84, 4294901760
    %288 = vmatpush.msra.mxu0 %v287
    %v289 = vand.u32 %v83, 4294901760
    %290 = vmatpush.msra.mxu0 %v289
    %v291 = vand.u32 %v82, 4294901760
    %292 = vmatpush.msra.mxu0 %v291
    %v293 = vand.u32 %v81, 4294901760
    %294 = vmatpush.msra.mxu0 %v293
    %v295 = vand.u32 %v80, 4294901760
    %296 = vmatpush.msra.mxu0 %v295
    %v297 = vand.u32 %v79, 4294901760
    %298 = vmatpush.msra.mxu0 %v297
    %v299 = vand.u32 %v78, 4294901760
    %300 = vmatpush.msra.mxu0 %v299
    %v301 = vand.u32 %v77, 4294901760
    %302 = vmatpush.msra.mxu0 %v301
    %v303 = vand.u32 %v76, 4294901760
    %304 = vmatpush.msra.mxu0 %v303
    %v305 = vand.u32 %v75, 4294901760
    %306 = vmatpush.msra.mxu0 %v305
    %v307 = vand.u32 %v74, 4294901760
    %308 = vmatpush.msra.mxu0 %v307
    %v309 = vand.u32 %v73, 4294901760
    %310 = vmatpush.msra.mxu0 %v309
    %v311 = vand.u32 %v72, 4294901760
    %312 = vmatpush.msra.mxu0 %v311
    %v313 = vand.u32 %v71, 4294901760
    %314 = vmatpush.msra.mxu0 %v313
    %v315 = vand.u32 %v70, 4294901760
    %v316 = vsub.f32 %v70, %v315
    %v317 = vand.u32 %v316, 4294901760
    %318 = vmatmul.f32.gmra.mxu0 %v317
    %v319 = vpop.f32.mrf.mxu0
    %v320 = vadd.f32 %v281, %v319
    %321 = vdwg.mxu0
    %v322 = vand.u32 %v86, 4294901760
    %v323 = vsub.f32 %v86, %v322
    %v324 = vand.u32 %v323, 4294901760
    %325 = vmatpush.msra.mxu0 %v324
    %v326 = vand.u32 %v85, 4294901760
    %v327 = vsub.f32 %v85, %v326
    %v328 = vand.u32 %v327, 4294901760
    %329 = vmatpush.msra.mxu0 %v328
    %v330 = vand.u32 %v84, 4294901760
    %v331 = vsub.f32 %v84, %v330
    %v332 = vand.u32 %v331, 4294901760
    %333 = vmatpush.msra.mxu0 %v332
    %v334 = vand.u32 %v83, 4294901760
    %v335 = vsub.f32 %v83, %v334
    %v336 = vand.u32 %v335, 4294901760
    %337 = vmatpush.msra.mxu0 %v336
    %v338 = vand.u32 %v82, 4294901760
    %v339 = vsub.f32 %v82, %v338
    %v340 = vand.u32 %v339, 4294901760
    %341 = vmatpush.msra.mxu0 %v340
    %v342 = vand.u32 %v81, 4294901760
    %v343 = vsub.f32 %v81, %v342
    %v344 = vand.u32 %v343, 4294901760
    %345 = vmatpush.msra.mxu0 %v344
    %v346 = vand.u32 %v80, 4294901760
    %v347 = vsub.f32 %v80, %v346
    %v348 = vand.u32 %v347, 4294901760
    %349 = vmatpush.msra.mxu0 %v348
    %v350 = vand.u32 %v79, 4294901760
    %v351 = vsub.f32 %v79, %v350
    %v352 = vand.u32 %v351, 4294901760
    %353 = vmatpush.msra.mxu0 %v352
    %v354 = vand.u32 %v78, 4294901760
    %v355 = vsub.f32 %v78, %v354
    %v356 = vand.u32 %v355, 4294901760
    %357 = vmatpush.msra.mxu0 %v356
    %v358 = vand.u32 %v77, 4294901760
    %v359 = vsub.f32 %v77, %v358
    %v360 = vand.u32 %v359, 4294901760
    %361 = vmatpush.msra.mxu0 %v360
    %v362 = vand.u32 %v76, 4294901760
    %v363 = vsub.f32 %v76, %v362
    %v364 = vand.u32 %v363, 4294901760
    %365 = vmatpush.msra.mxu0 %v364
    %v366 = vand.u32 %v75, 4294901760
    %v367 = vsub.f32 %v75, %v366
    %v368 = vand.u32 %v367, 4294901760
    %369 = vmatpush.msra.mxu0 %v368
    %v370 = vand.u32 %v74, 4294901760
    %v371 = vsub.f32 %v74, %v370
    %v372 = vand.u32 %v371, 4294901760
    %373 = vmatpush.msra.mxu0 %v372
    %v374 = vand.u32 %v73, 4294901760
    %v375 = vsub.f32 %v73, %v374
    %v376 = vand.u32 %v375, 4294901760
    %377 = vmatpush.msra.mxu0 %v376
    %v378 = vand.u32 %v72, 4294901760
    %v379 = vsub.f32 %v72, %v378
    %v380 = vand.u32 %v379, 4294901760
    %381 = vmatpush.msra.mxu0 %v380
    %v382 = vand.u32 %v71, 4294901760
    %v383 = vsub.f32 %v71, %v382
    %v384 = vand.u32 %v383, 4294901760
    %385 = vmatpush.msra.mxu0 %v384
    %v386 = vand.u32 %v70, 4294901760
    %387 = vmatmul.f32.gmra.mxu0 %v386
    %v388 = vpop.f32.mrf.mxu0
    %v389 = vadd.f32 %v320, %v388
    %390 = vdwg.mxu0
    %v391 = vand.u32 %v86, 4294901760
    %392 = vmatpush.msra.mxu0 %v391
    %v393 = vand.u32 %v85, 4294901760
    %394 = vmatpush.msra.mxu0 %v393
    %v395 = vand.u32 %v84, 4294901760
    %396 = vmatpush.msra.mxu0 %v395
    %v397 = vand.u32 %v83, 4294901760
    %398 = vmatpush.msra.mxu0 %v397
    %v399 = vand.u32 %v82, 4294901760
    %400 = vmatpush.msra.mxu0 %v399
    %v401 = vand.u32 %v81, 4294901760
    %402 = vmatpush.msra.mxu0 %v401
    %v403 = vand.u32 %v80, 4294901760
    %404 = vmatpush.msra.mxu0 %v403
    %v405 = vand.u32 %v79, 4294901760
    %406 = vmatpush.msra.mxu0 %v405
    %v407 = vand.u32 %v78, 4294901760
    %408 = vmatpush.msra.mxu0 %v407
    %v409 = vand.u32 %v77, 4294901760
    %410 = vmatpush.msra.mxu0 %v409
    %v411 = vand.u32 %v76, 4294901760
    %412 = vmatpush.msra.mxu0 %v411
    %v413 = vand.u32 %v75, 4294901760
    %414 = vmatpush.msra.mxu0 %v413
    %v415 = vand.u32 %v74, 4294901760
    %416 = vmatpush.msra.mxu0 %v415
    %v417 = vand.u32 %v73, 4294901760
    %418 = vmatpush.msra.mxu0 %v417
    %v419 = vand.u32 %v72, 4294901760
    %420 = vmatpush.msra.mxu0 %v419
    %v421 = vand.u32 %v71, 4294901760
    %422 = vmatpush.msra.mxu0 %v421
    %v423 = vand.u32 %v70, 4294901760
    %424 = vmatmul.f32.gmra.mxu0 %v423
    %v425 = vpop.f32.mrf.mxu0
    %v426 = vadd.f32 %v389, %v425
    %427 = vdwg.mxu0
    %v428 = vmul.f32 %v64, %v426
    %v429 = vld [vmem:[%s3] sm:$0x1]
    %v431 = vperm.slane %v429, 0
    %v433 = vadd.f32 %v431, %v65
    %v434 = vadd.f32 %v428, %v433
    %435 = vst [vmem:[#allocation8] sm:$0x3] %v434
    // Predicated region
    $region34: #{tpu_custom_call.1} parent=1 // pred_check
      _
    $region35: #{tpu_custom_call.1} parent=1 // pred_check_branch
      %437 = sbr.rel (0) target = $region37
    $region36: #{tpu_custom_call.1} parent=1 // pred_region
      %439 = vsyncadd [#allocation4], 0
      %s441 = sshll.u32 [#allocation8], 4
      %s442 = int_to_ptr.vmem [resolvable:$true] %s441
      %s443 = sshll.u32 %s5, 4
      %s444 = int_to_ptr.hbm [resolvable:$true] %s443
      %446 = dma.vmem_to_hbm [thread:$0]  %s442, 32, %s444, [#allocation4]
    $region37: #{tpu_custom_call.1} parent=1 // pred_fallthru
      _
    // Predicated region
    $region38: #{tpu_custom_call.1} parent=1 // pred_check
      _
    $region39: #{tpu_custom_call.1} parent=1 // pred_check_branch
      %448 = sbr.rel (0) target = $region41
    $region40: #{tpu_custom_call.1} parent=1 // pred_region
      %450 = dma.done [#allocation4], 32
    $region41: #{tpu_custom_call.1} parent=1 // pred_fallthru
      _
    %451 = vsyncpa [#allocation3], 1
    %452 = vsyncpa [#allocation6], 1
    %453 = vsyncpa [#allocation4], 1

</llo_original>
